<compile_context>
chip_gen: v7x
topology: tpu7x:2x2x1
jax: 0.10.0
libtpu: 0.0.40
codegen_flags: <defaults>
</compile_context>

<pallas_src>
import functools

import jax
import jax.numpy as jnp
from jax.experimental import pallas as pl
from jax.experimental.pallas import tpu as pltpu

_LANE = 128
_SUBLANE_BF16 = 16  # bf16 packs 2 rows per sublane -> keep row tiles 16-aligned


def _round_up(x, m):
    return ((x + m - 1) // m) * m


def _pad2(a, rows, cols):
    return jnp.pad(a, ((0, rows - a.shape[0]), (0, cols - a.shape[1])))


def _fused_sage_kernel(a_ref, x_ref, w1_ref, b1_ref, w2_ref, b2_ref,
                       o_ref, h_ref, *, tm, a_resident):
    """Fused 2-layer SAGE.  Grid = (phase, node_tile), both sequential ("arbitrary").

    phase 0: h[tile] = relu([A[tile] @ X | X[tile]] @ W1_cat + b1)  -> bf16 VMEM scratch
    phase 1: out[tile] = [A[tile] @ h  | h[tile]] @ W2_cat + b2     -> HBM (f32)
    """
    p = pl.program_id(0)
    j = pl.program_id(1)
    row0 = pl.multiple_of(j * tm, tm)

    if a_resident:
        a_tile = a_ref[pl.ds(row0, tm), :]   # A fully resident in VMEM (DMA'd once)
    else:
        a_tile = a_ref[...]                  # streamed (tm, Np) row tile

    @pl.when(p == 0)
    def _layer1():
        # bf16 MXU matmuls, f32 accumulation.
        agg = jnp.dot(a_tile, x_ref[...], preferred_element_type=jnp.float32)
        cat = jnp.concatenate(
            [agg.astype(jnp.bfloat16), x_ref[pl.ds(row0, tm), :]], axis=-1)
        h = jnp.dot(cat, w1_ref[...], preferred_element_type=jnp.float32)
        h = jnp.maximum(h + b1_ref[...], 0.0)                      # f32 epilogue
        h_ref[pl.ds(row0, tm), :] = h.astype(jnp.bfloat16)

    @pl.when(p == 1)
    def _layer2():
        agg = jnp.dot(a_tile, h_ref[...], preferred_element_type=jnp.float32)
        cat = jnp.concatenate(
            [agg.astype(jnp.bfloat16), h_ref[pl.ds(row0, tm), :]], axis=-1)
        out = jnp.dot(cat, w2_ref[...], preferred_element_type=jnp.float32)
        o_ref[...] = (out + b2_ref[...]).astype(o_ref.dtype)


def _vmem_capacity_bytes():
    try:
        return int(pltpu.get_tpu_info().vmem_capacity_bytes)
    except Exception:
        return 64 * 1024 * 1024  # conservative fallback: v7x per-TensorCore VMEM


def fused_sage_encoder(a_mean, x, w1_cat, b1, w2_cat, b2, *, tm):
    """a_mean:(Np,Np) bf16, x:(Np,Fp) bf16, w*_cat bf16, b* f32 (1,Fout_p)."""
    n_pad = a_mean.shape[0]
    fp = x.shape[1]
    hp = w1_cat.shape[1]
    op = w2_cat.shape[1]
    num_tiles = n_pad // tm

    vmem_cap = _vmem_capacity_bytes()
    vmem_budget = min(max(int(vmem_cap * 0.75), 32 * 1024 * 1024), 100 * 1024 * 1024)

    # Resident-set estimate (bytes): A (+ double buffer if streamed), X, h, weights,
    # plus f32 per-step temporaries.
    def estimate(resident):
        a_b = (2 * n_pad * n_pad) if resident else (2 * 2 * tm * n_pad)
        x_b = 2 * n_pad * fp
        h_b = 2 * n_pad * hp
        w_b = 2 * (2 * fp * hp + 2 * hp * op) + 4 * (hp + op)
        tmp = 4 * tm * (n_pad + 2 * max(fp, hp) + max(hp, op))
        return a_b + x_b + h_b + w_b + tmp

    # Small-graph fast path: keep A resident so the dominant HBM stream is read once.
    a_resident = estimate(True) <= vmem_budget
    # TODO(synk): if even estimate(False) > vmem_budget (huge graphs), split into two
    # pallas_calls with h round-tripping HBM in bf16 instead of the fused VMEM scratch.

    if a_resident:
        a_spec = pl.BlockSpec((n_pad, n_pad), lambda p, j: (0, 0))
    else:
        a_spec = pl.BlockSpec((tm, n_pad), lambda p, j: (j, 0))

    flops = 2 * n_pad * n_pad * (fp + hp) + 2 * n_pad * (2 * fp * hp + 2 * hp * op)
    bytes_accessed = (n_pad * n_pad * 2 * (1 if a_resident else 2)
                      + n_pad * fp * 2 + n_pad * op * 4
                      + (2 * fp * hp + 2 * hp * op) * 2)

    kernel = functools.partial(_fused_sage_kernel, tm=tm, a_resident=a_resident)

    # NOTE: both grid axes MUST stay "arbitrary": phase 1 reads the h scratch written
    # by every phase-0 node tile; parallel/core-sharded execution would corrupt it.
    return pl.pallas_call(
        kernel,
        out_shape=jax.ShapeDtypeStruct((n_pad, op), jnp.float32),
        grid=(2, num_tiles),
        in_specs=[
            a_spec,                                              # A (resident or tiled)
            pl.BlockSpec((n_pad, fp), lambda p, j: (0, 0)),      # X bf16 (loaded once)
            pl.BlockSpec((2 * fp, hp), lambda p, j: (0, 0)),     # W1_cat bf16
            pl.BlockSpec((1, hp), lambda p, j: (0, 0)),          # b1 f32
            pl.BlockSpec((2 * hp, op), lambda p, j: (0, 0)),     # W2_cat bf16
            pl.BlockSpec((1, op), lambda p, j: (0, 0)),          # b2 f32
        ],
        # Collapse all phase-0 steps onto output block (0, 0): no uninitialized tiles
        # are written back to HBM before phase 1 fills them.
        out_specs=pl.BlockSpec((tm, op), lambda p, j: (j * p, 0)),
        scratch_shapes=[pltpu.VMEM((n_pad, hp), jnp.bfloat16)],  # intermediate h (bf16)
        compiler_params=pltpu.CompilerParams(
            dimension_semantics=("arbitrary", "arbitrary"),
            vmem_limit_bytes=vmem_budget,
        ),
        cost_estimate=pl.CostEstimate(flops=flops, transcendentals=0,
                                      bytes_accessed=bytes_accessed),
    )(a_mean, x, w1_cat, b1, w2_cat, b2)


def build_mean_adjacency(edge_index, num_nodes, n_pad):
    """Dense row-normalized adjacency, zero-padded to (n_pad, n_pad), in bf16.

    Normalization (1/deg) is fused into the edge scatter, so there is a single
    O(N^2) pass plus the pad/cast (degree is computed with an O(E) scatter).
    """
    src = edge_index[0]
    dst = edge_index[1]
    deg = jnp.zeros((num_nodes,), jnp.float32).at[dst].add(1.0)
    inv_deg = jnp.where(deg > 0, 1.0 / jnp.maximum(deg, 1.0), 0.0)
    a = jnp.zeros((num_nodes, num_nodes), jnp.float32)
    a = a.at[dst, src].add(inv_deg[dst])
    a = a.astype(jnp.bfloat16)
    return jnp.pad(a, ((0, n_pad - num_nodes), (0, n_pad - num_nodes)))


def gnn_encoder_forward(x, edge_index, params):
    n, f_in = x.shape
    f_hid = params["w1_l"].shape[1]
    f_out = params["w2_l"].shape[1]

    # Lane-dense, sublane-aligned padded layout. Row tile up to 256 (fewer grid
    # steps, larger A DMA bursts, matches 256-wide MXU); small graphs get one tile.
    n16 = _round_up(n, _SUBLANE_BF16)
    tm = min(256, n16)
    n_pad = _round_up(n, tm)
    fp = _round_up(f_in, _LANE)
    hp = _round_up(f_hid, _LANE)
    op = _round_up(f_out, _LANE)

    a_mean = build_mean_adjacency(edge_index, n, n_pad)
    x_p = _pad2(x.astype(jnp.float32), n_pad, fp).astype(jnp.bfloat16)  # cast once

    # Merge lin_l / lin_r into one contraction; zero padding keeps semantics exact.
    w1_cat = jnp.concatenate(
        [_pad2(params["w1_l"], fp, hp), _pad2(params["w1_r"], fp, hp)],
        axis=0).astype(jnp.bfloat16)
    b1 = _pad2(params["b1_l"], 1, hp)
    w2_cat = jnp.concatenate(
        [_pad2(params["w2_l"], hp, op), _pad2(params["w2_r"], hp, op)],
        axis=0).astype(jnp.bfloat16)
    b2 = _pad2(params["b2_l"], 1, op)

    out_p = fused_sage_encoder(a_mean, x_p, w1_cat, b1, w2_cat, b2, tm=tm)
    return out_p[:n, :f_out]


def gnn_reference(x, edge_index, params):
    """Pure-JAX f32 reference (dense adjacency) for correctness checking."""
    n = x.shape[0]
    a = jnp.zeros((n, n), jnp.float32).at[edge_index[1], edge_index[0]].add(1.0)
    deg = a.sum(axis=1, keepdims=True)
    a = jnp.where(deg > 0, a / jnp.maximum(deg, 1.0), 0.0)
    h = a @ x @ params["w1_l"] + x @ params["w1_r"] + params["b1_l"]
    h = jnp.maximum(h, 0.0)
    return a @ h @ params["w2_l"] + h @ params["w2_r"] + params["b2_l"]


def init_params(key, in_channels, hidden_channels, out_channels):
    ks = jax.random.split(key, 4)

    def glorot(k, fin, fout):
        scale = jnp.sqrt(6.0 / (fin + fout))
        return jax.random.uniform(k, (fin, fout), jnp.float32, -scale, scale)

    return {
        # conv1: lin_l (with bias), lin_r (no bias)
        "w1_l": glorot(ks[0], in_channels, hidden_channels),
        "w1_r": glorot(ks[1], in_channels, hidden_channels),
        "b1_l": jnp.zeros((1, hidden_channels), jnp.float32),
        # conv2
        "w2_l": glorot(ks[2], hidden_channels, out_channels),
        "w2_r": glorot(ks[3], hidden_channels, out_channels),
        "b2_l": jnp.zeros((1, out_channels), jnp.float32),
    }


if __name__ == "__main__":
    key = jax.random.PRNGKey(0)
    k_x, k_e, k_p = jax.random.split(key, 3)

    num_nodes = 16
    in_channels = 8
    hidden_channels = 32
    out_channels = 16
    num_edges = 40

    x = jax.random.normal(k_x, (num_nodes, in_channels), jnp.float32)
    edge_index = jax.random.randint(k_e, (2, num_edges), 0, num_nodes, jnp.int32)

    params = init_params(k_p, in_channels, hidden_channels, out_channels)

    out = gnn_encoder_forward(x, edge_index, params)
    jax.block_until_ready(out)
    assert out.shape == (num_nodes, out_channels)

    ref = gnn_reference(x, edge_index, params)
    assert bool(jnp.allclose(out, ref, atol=1e-1, rtol=1e-1)), "mismatch vs JAX reference"

    print("KERNEL_OK")
</pallas_src>

<mosaic_0001>
module attributes {stable_mosaic.version = 11 : i64} {
  func.func @_fused_sage_kernel(%arg0: i32, %arg1: i32, %arg2: memref<16x16xbf16, #tpu.memory_space<vmem>>, %arg3: memref<16x128xbf16, #tpu.memory_space<vmem>>, %arg4: memref<256x128xbf16, #tpu.memory_space<vmem>>, %arg5: memref<1x128xf32, #tpu.memory_space<vmem>>, %arg6: memref<256x128xbf16, #tpu.memory_space<vmem>>, %arg7: memref<1x128xf32, #tpu.memory_space<vmem>>, %arg8: memref<16x128xf32, #tpu.memory_space<vmem>>, %arg9: memref<16x128xbf16, #tpu.memory_space<vmem>>) attributes {dimension_semantics = [#tpu.dimension_semantics<arbitrary>, #tpu.dimension_semantics<arbitrary>], iteration_bounds = array<i64: 2, 1>, scalar_prefetch = 0 : i64, scratch_operands = 1 : i64, tpu.core_type = #tpu.core_type<tc>, window_params = [{pipeline_mode = #tpu.pipeline_mode<synchronous>, transform_indices = @transform_0, window_bounds = array<i64: 16, 16>}, {pipeline_mode = #tpu.pipeline_mode<synchronous>, transform_indices = @transform_1, window_bounds = array<i64: 16, 128>}, {pipeline_mode = #tpu.pipeline_mode<synchronous>, transform_indices = @transform_2, window_bounds = array<i64: 256, 128>}, {pipeline_mode = #tpu.pipeline_mode<synchronous>, transform_indices = @transform_3, window_bounds = array<i64: 1, 128>}, {pipeline_mode = #tpu.pipeline_mode<synchronous>, transform_indices = @transform_4, window_bounds = array<i64: 256, 128>}, {pipeline_mode = #tpu.pipeline_mode<synchronous>, transform_indices = @transform_5, window_bounds = array<i64: 1, 128>}, {transform_indices = @transform_6, window_bounds = array<i64: 16, 128>}]} {
    %c16_i32 = arith.constant 16 : i32
    %0 = arith.muli %arg1, %c16_i32 : i32
    %1 = tpu.assume_multiple %0, 16 : i32
    %2 = arith.index_cast %1 : i32 to index
    %c0 = arith.constant 0 : index
    %3 = vector.load %arg2[%2, %c0] : memref<16x16xbf16, #tpu.memory_space<vmem>>, vector<16x16xbf16>
    %c0_i32 = arith.constant 0 : i32
    %4 = arith.cmpi eq, %arg0, %c0_i32 : i32
    %5 = arith.extui %4 : i1 to i32
    %c0_i32_0 = arith.constant 0 : i32
    %6 = arith.cmpi ne, %5, %c0_i32_0 : i32
    scf.if %6 {
      %c0_2 = arith.constant 0 : index
      %c0_3 = arith.constant 0 : index
      %10 = vector.load %arg3[%c0_2, %c0_3] : memref<16x128xbf16, #tpu.memory_space<vmem>>, vector<16x128xbf16>
      %cst = arith.constant dense<0.000000e+00> : vector<16x128xf32>
      %11 = tpu.matmul %3, %10, %cst {dimension_numbers = #tpu.dot_dimension_numbers<[1], [0], [0], [1], [0, 0, 1, 1], [], []>} : vector<16x16xbf16>, vector<16x128xbf16>, vector<16x128xf32> -> vector<16x128xf32>
      %12 = arith.truncf %11 : vector<16x128xf32> to vector<16x128xbf16>
      %13 = arith.index_cast %1 : i32 to index
      %c0_4 = arith.constant 0 : index
      %14 = vector.load %arg3[%13, %c0_4] : memref<16x128xbf16, #tpu.memory_space<vmem>>, vector<16x128xbf16>
      %15 = tpu.concatenate %12, %14 in 1 : vector<16x128xbf16>, vector<16x128xbf16> -> vector<16x256xbf16>
      %c0_5 = arith.constant 0 : index
      %c0_6 = arith.constant 0 : index
      %16 = vector.load %arg4[%c0_5, %c0_6] : memref<256x128xbf16, #tpu.memory_space<vmem>>, vector<256x128xbf16>
      %cst_7 = arith.constant dense<0.000000e+00> : vector<16x128xf32>
      %17 = tpu.matmul %15, %16, %cst_7 {dimension_numbers = #tpu.dot_dimension_numbers<[1], [0], [0], [1], [0, 0, 1, 1], [], []>} : vector<16x256xbf16>, vector<256x128xbf16>, vector<16x128xf32> -> vector<16x128xf32>
      %c0_8 = arith.constant 0 : index
      %c0_9 = arith.constant 0 : index
      %18 = vector.load %arg5[%c0_8, %c0_9] : memref<1x128xf32, #tpu.memory_space<vmem>>, vector<1x128xf32>
      %19 = vector.broadcast %18 : vector<1x128xf32> to vector<16x128xf32>
      %20 = arith.addf %17, %19 : vector<16x128xf32>
      %cst_10 = arith.constant 0.000000e+00 : f32
      %21 = vector.broadcast %cst_10 : f32 to vector<16x128xf32>
      %22 = arith.maximumf %20, %21 : vector<16x128xf32>
      %23 = arith.truncf %22 : vector<16x128xf32> to vector<16x128xbf16>
      %24 = arith.index_cast %1 : i32 to index
      %c0_11 = arith.constant 0 : index
      %25 = vector.load %arg9[%24, %c0_11] : memref<16x128xbf16, #tpu.memory_space<vmem>>, vector<16x128xbf16>
      tpu.vector_store %arg9[%24, %c0_11], %23 {strides = array<i32>} : memref<16x128xbf16, #tpu.memory_space<vmem>>, vector<16x128xbf16>,
    } else {
    }
    %c1_i32 = arith.constant 1 : i32
    %7 = arith.cmpi eq, %arg0, %c1_i32 : i32
    %8 = arith.extui %7 : i1 to i32
    %c0_i32_1 = arith.constant 0 : i32
    %9 = arith.cmpi ne, %8, %c0_i32_1 : i32
    scf.if %9 {
      %c0_2 = arith.constant 0 : index
      %c0_3 = arith.constant 0 : index
      %10 = vector.load %arg9[%c0_2, %c0_3] : memref<16x128xbf16, #tpu.memory_space<vmem>>, vector<16x128xbf16>
      %cst = arith.constant dense<0.000000e+00> : vector<16x128xf32>
      %11 = tpu.matmul %3, %10, %cst {dimension_numbers = #tpu.dot_dimension_numbers<[1], [0], [0], [1], [0, 0, 1, 1], [], []>} : vector<16x16xbf16>, vector<16x128xbf16>, vector<16x128xf32> -> vector<16x128xf32>
      %12 = arith.truncf %11 : vector<16x128xf32> to vector<16x128xbf16>
      %13 = arith.index_cast %1 : i32 to index
      %c0_4 = arith.constant 0 : index
      %14 = vector.load %arg9[%13, %c0_4] : memref<16x128xbf16, #tpu.memory_space<vmem>>, vector<16x128xbf16>
      %15 = tpu.concatenate %12, %14 in 1 : vector<16x128xbf16>, vector<16x128xbf16> -> vector<16x256xbf16>
      %c0_5 = arith.constant 0 : index
      %c0_6 = arith.constant 0 : index
      %16 = vector.load %arg6[%c0_5, %c0_6] : memref<256x128xbf16, #tpu.memory_space<vmem>>, vector<256x128xbf16>
      %cst_7 = arith.constant dense<0.000000e+00> : vector<16x128xf32>
      %17 = tpu.matmul %15, %16, %cst_7 {dimension_numbers = #tpu.dot_dimension_numbers<[1], [0], [0], [1], [0, 0, 1, 1], [], []>} : vector<16x256xbf16>, vector<256x128xbf16>, vector<16x128xf32> -> vector<16x128xf32>
      %c0_8 = arith.constant 0 : index
      %c0_9 = arith.constant 0 : index
      %18 = vector.load %arg7[%c0_8, %c0_9] : memref<1x128xf32, #tpu.memory_space<vmem>>, vector<1x128xf32>
      %19 = vector.broadcast %18 : vector<1x128xf32> to vector<16x128xf32>
      %20 = arith.addf %17, %19 : vector<16x128xf32>
      %c0_10 = arith.constant 0 : index
      %c0_11 = arith.constant 0 : index
      %21 = vector.load %arg8[%c0_10, %c0_11] : memref<16x128xf32, #tpu.memory_space<vmem>>, vector<16x128xf32>
      tpu.vector_store %arg8[%c0_10, %c0_11], %20 {strides = array<i32>} : memref<16x128xf32, #tpu.memory_space<vmem>>, vector<16x128xf32>,
    } else {
    }
    return
  }
  func.func @transform_0(%arg0: i32, %arg1: i32) -> (i32, i32) {
    %c0_i32 = arith.constant 0 : i32
    %c0_i32_0 = arith.constant 0 : i32
    %c0_i32_1 = arith.constant 0 : i32
    return %c0_i32, %c0_i32_0 : i32, i32
  }
  func.func @transform_1(%arg0: i32, %arg1: i32) -> (i32, i32) {
    %c0_i32 = arith.constant 0 : i32
    %c0_i32_0 = arith.constant 0 : i32
    %c0_i32_1 = arith.constant 0 : i32
    return %c0_i32, %c0_i32_0 : i32, i32
  }
  func.func @transform_2(%arg0: i32, %arg1: i32) -> (i32, i32) {
    %c0_i32 = arith.constant 0 : i32
    %c0_i32_0 = arith.constant 0 : i32
    %c0_i32_1 = arith.constant 0 : i32
    return %c0_i32, %c0_i32_0 : i32, i32
  }
  func.func @transform_3(%arg0: i32, %arg1: i32) -> (i32, i32) {
    %c0_i32 = arith.constant 0 : i32
    %c0_i32_0 = arith.constant 0 : i32
    %c0_i32_1 = arith.constant 0 : i32
    return %c0_i32, %c0_i32_0 : i32, i32
  }
  func.func @transform_4(%arg0: i32, %arg1: i32) -> (i32, i32) {
    %c0_i32 = arith.constant 0 : i32
    %c0_i32_0 = arith.constant 0 : i32
    %c0_i32_1 = arith.constant 0 : i32
    return %c0_i32, %c0_i32_0 : i32, i32
  }
  func.func @transform_5(%arg0: i32, %arg1: i32) -> (i32, i32) {
    %c0_i32 = arith.constant 0 : i32
    %c0_i32_0 = arith.constant 0 : i32
    %c0_i32_1 = arith.constant 0 : i32
    return %c0_i32, %c0_i32_0 : i32, i32
  }
  func.func @transform_6(%arg0: i32, %arg1: i32) -> (i32, i32) {
    %0 = arith.muli %arg1, %arg0 : i32
    %c0_i32 = arith.constant 0 : i32
    %c0_i32_0 = arith.constant 0 : i32
    return %0, %c0_i32 : i32, i32
  }
}

</mosaic_0001>

<llo_original>
// kernel: tpu_custom_call.1
$region0: #{tpu_custom_call.1}
  #allocation0 [shape = 'u32[]', space=smem, size = 0x4, offset = 0x4, fixed_abs, tag = 'smem constant byte address 0x4 - core index']
  #allocation1 [shape = 'u32[144,128]{1,0:T(1,128)}', space=vmem, size = 0x12000, scoped, tag = 'internal scratch']
  #allocation2 [shape = 'bf16[16,128]{1,0:T(16,128)(2,1)}', space=vmem, size = 0x1000, scoped, tag = 'scratch operand']
  %s0 = inlined_call_operand.hbm [shape: bf16[16,16], index: 0, kind: input, shape index: {}]
  %s1 = inlined_call_operand.hbm [shape: bf16[16,128], index: 1, kind: input, shape index: {}]
  %s2 = inlined_call_operand.hbm [shape: bf16[256,128], index: 2, kind: input, shape index: {}]
  %s3 = inlined_call_operand.vmem [shape: f32[1,128], index: 3, kind: input, shape index: {}]
  %s4 = inlined_call_operand.hbm [shape: bf16[256,128], index: 4, kind: input, shape index: {}]
  %s5 = inlined_call_operand.vmem [shape: f32[1,128], index: 5, kind: input, shape index: {}]
  %s6 = inlined_call_operand.hbm [shape: f32[16,128], index: 6, kind: output, shape index: {}]
  %s7 = sld [smem:[#allocation0]]
  $region81: #{tpu_custom_call.1} parent=0
    _
  %s9 = ssub.s32 1, %s7
  %s10 = scalar_select 0, %s9, %s7
  $region1: #{tpu_custom_call.1} parent=0
    #allocation3 [shape = 'u8[4096]{0}', space=vmem, size = 0x1000, scoped, tag = 'input window, operand 0, single buffered']
    #allocation4 [shape = 's32[2]{0}', space=sflag, size = 0x8, scoped, tag = 'scoped memory for tpu_custom_call.1']
    #allocation5 [shape = 's32[2]{0}', space=sflag, size = 0x8, scoped, tag = 'scoped memory for tpu_custom_call.1']
    #allocation6 [shape = 'u8[4096]{0}', space=vmem, size = 0x1000, scoped, tag = 'input window, operand 1, single buffered']
    #allocation7 [shape = 's32[1]{0}', space=sflag, size = 0x4, scoped, tag = 'scoped memory for tpu_custom_call.1']
    #allocation8 [shape = 'u8[65536]{0}', space=vmem, size = 0x10000, scoped, tag = 'input window, operand 2, single buffered']
    #allocation9 [shape = 'u8[65536]{0}', space=vmem, size = 0x10000, scoped, tag = 'input window, operand 4, single buffered']
    #allocation10 [shape = 's32[1]{0}', space=sflag, size = 0x4, scoped, tag = 'scoped memory for tpu_custom_call.1']
    #allocation11 [shape = 'u8[16384]{0}', space=vmem, size = 0x4000, scoped, tag = 'output window, operand 0']
    %11 = vsyncpa [#allocation4], 0
    %12 = vsyncpa [#allocation7], 0
    %13 = vsyncpa [#allocation10], 0
    %14 = vsyncpa [#allocation5], 0
    %s15 = scalar_lea.sflag [#allocation5], 1
    %16 = vsyncpa %s15, 0
    loop: start=0, step=1, limit=4
    $region2: #{tpu_custom_call.1} parent=1 // loop_pre_header
      _
    $region3: #{tpu_custom_call.1} parent=1 // loop_header
      %s18 = sphi 0, %s22
      %p19 = scmp.ge.s32.totalorder %s18, 4
      %s25 = sphi 0, %s37
      %s26 = sphi 0, %s33
      %s27 = sphi 0, %s25
      %s28 = sphi 0, %s26
      %s29 = sphi 0, %s27
      %s30 = sphi 0, %s28
      %s38 = sphi 0, %s38
      %s40 = sphi 0, %s38
      %s41 = sphi 0, %s40
      %s55 = sphi 0, %s41
      %s59 = sphi 0, %s59
      %s61 = sphi 0, %s59
      %s62 = sphi 0, %s61
      %s76 = sphi 0, %s62
      %s80 = sphi 0, %s80
      %s82 = sphi 0, %s80
      %s83 = sphi 0, %s82
      %s97 = sphi 0, %s83
      %s101 = sphi 0, %s101
      %s103 = sphi 0, %s101
      %s104 = sphi 0, %s103
      %s118 = sphi 0, %s104
      %s122 = sphi 0, %s122
      %s124 = sphi 0, %s122
      %s125 = sphi 0, %s124
      %s139 = sphi 0, %s125
      %s143 = sphi 0, %s143
      %s145 = sphi 0, %s143
      %s146 = sphi 0, %s145
      %s160 = sphi 0, %s146
      %s168 = sphi 0, %s170
      %s171 = sphi 0, %s168
      %s172 = sphi 0, %s171
      %s188 = sphi 0, %s172
    $region4: #{tpu_custom_call.1} parent=1 // loop_header_branch
      %21 = sbr.rel (%p19) target = $region8
    $region5: #{tpu_custom_call.1} parent=1 // loop_body
      %s23 = ssub.s32 %s18, 1
      %s24 = ssub.s32 %s18, 2
      %s31 = sadd.s32 1, %s26
      %p32 = scmp.ge.s32.totalorder %s31, 1
      %s33 = scalar_select %p32, 0, %s31
      %s34 = sadd.s32 1, %s25
      %s35 = scalar_select %p32, %s34, %s25
      %p36 = scmp.ge.s32.totalorder %s35, 2
      %s37 = scalar_select %p36, 0, %s35
      %s39 = sadd.s32 %s38, 1
      %p42 = scmp.eq.s32.totalorder %s18, 1
      %p43 = scmp.ne.s32.totalorder %s38, %s40
      %p44 = scmp.eq.s32.totalorder %s18, 0
      %p45 = por %p43, %p44
      %p46 = scmp.ne.s32.totalorder %s38, %s40
      %p47 = scmp.eq.s32.totalorder %s23, 1
      %p48 = por %p46, %p47
      %p49 = scmp.ne.s32.totalorder %s40, %s41
      %p50 = scmp.eq.s32.totalorder %s23, 0
      %p51 = por %p49, %p50
      %p52 = scmp.ne.s32.totalorder %s40, %s41
      %p53 = scmp.eq.s32.totalorder %s24, 1
      %p54 = por %p52, %p53
      %p56 = scmp.ne.s32.totalorder %s41, %s55
      %p57 = scmp.eq.s32.totalorder %s24, 0
      %p58 = por %p56, %p57
      %s60 = sadd.s32 %s59, 1
      %p63 = scmp.eq.s32.totalorder %s18, 1
      %p64 = scmp.ne.s32.totalorder %s59, %s61
      %p65 = scmp.eq.s32.totalorder %s18, 0
      %p66 = por %p64, %p65
      %p67 = scmp.ne.s32.totalorder %s59, %s61
      %p68 = scmp.eq.s32.totalorder %s23, 1
      %p69 = por %p67, %p68
      %p70 = scmp.ne.s32.totalorder %s61, %s62
      %p71 = scmp.eq.s32.totalorder %s23, 0
      %p72 = por %p70, %p71
      %p73 = scmp.ne.s32.totalorder %s61, %s62
      %p74 = scmp.eq.s32.totalorder %s24, 1
      %p75 = por %p73, %p74
      %p77 = scmp.ne.s32.totalorder %s62, %s76
      %p78 = scmp.eq.s32.totalorder %s24, 0
      %p79 = por %p77, %p78
      %s81 = sadd.s32 %s80, 1
      %p84 = scmp.eq.s32.totalorder %s18, 1
      %p85 = scmp.ne.s32.totalorder %s80, %s82
      %p86 = scmp.eq.s32.totalorder %s18, 0
      %p87 = por %p85, %p86
      %p88 = scmp.ne.s32.totalorder %s80, %s82
      %p89 = scmp.eq.s32.totalorder %s23, 1
      %p90 = por %p88, %p89
      %p91 = scmp.ne.s32.totalorder %s82, %s83
      %p92 = scmp.eq.s32.totalorder %s23, 0
      %p93 = por %p91, %p92
      %p94 = scmp.ne.s32.totalorder %s82, %s83
      %p95 = scmp.eq.s32.totalorder %s24, 1
      %p96 = por %p94, %p95
      %p98 = scmp.ne.s32.totalorder %s83, %s97
      %p99 = scmp.eq.s32.totalorder %s24, 0
      %p100 = por %p98, %p99
      %s102 = sadd.s32 %s101, 1
      %p105 = scmp.eq.s32.totalorder %s18, 1
      %p106 = scmp.ne.s32.totalorder %s101, %s103
      %p107 = scmp.eq.s32.totalorder %s18, 0
      %p108 = por %p106, %p107
      %p109 = scmp.ne.s32.totalorder %s101, %s103
      %p110 = scmp.eq.s32.totalorder %s23, 1
      %p111 = por %p109, %p110
      %p112 = scmp.ne.s32.totalorder %s103, %s104
      %p113 = scmp.eq.s32.totalorder %s23, 0
      %p114 = por %p112, %p113
      %p115 = scmp.ne.s32.totalorder %s103, %s104
      %p116 = scmp.eq.s32.totalorder %s24, 1
      %p117 = por %p115, %p116
      %p119 = scmp.ne.s32.totalorder %s104, %s118
      %p120 = scmp.eq.s32.totalorder %s24, 0
      %p121 = por %p119, %p120
      %s123 = sadd.s32 %s122, 1
      %p126 = scmp.eq.s32.totalorder %s18, 1
      %p127 = scmp.ne.s32.totalorder %s122, %s124
      %p128 = scmp.eq.s32.totalorder %s18, 0
      %p129 = por %p127, %p128
      %p130 = scmp.ne.s32.totalorder %s122, %s124
      %p131 = scmp.eq.s32.totalorder %s23, 1
      %p132 = por %p130, %p131
      %p133 = scmp.ne.s32.totalorder %s124, %s125
      %p134 = scmp.eq.s32.totalorder %s23, 0
      %p135 = por %p133, %p134
      %p136 = scmp.ne.s32.totalorder %s124, %s125
      %p137 = scmp.eq.s32.totalorder %s24, 1
      %p138 = por %p136, %p137
      %p140 = scmp.ne.s32.totalorder %s125, %s139
      %p141 = scmp.eq.s32.totalorder %s24, 0
      %p142 = por %p140, %p141
      %s144 = sadd.s32 %s143, 1
      %p147 = scmp.eq.s32.totalorder %s18, 1
      %p148 = scmp.ne.s32.totalorder %s143, %s145
      %p149 = scmp.eq.s32.totalorder %s18, 0
      %p150 = por %p148, %p149
      %p151 = scmp.ne.s32.totalorder %s143, %s145
      %p152 = scmp.eq.s32.totalorder %s23, 1
      %p153 = por %p151, %p152
      %p154 = scmp.ne.s32.totalorder %s145, %s146
      %p155 = scmp.eq.s32.totalorder %s23, 0
      %p156 = por %p154, %p155
      %p157 = scmp.ne.s32.totalorder %s145, %s146
      %p158 = scmp.eq.s32.totalorder %s24, 1
      %p159 = por %p157, %p158
      %p161 = scmp.ne.s32.totalorder %s146, %s160
      %p162 = scmp.eq.s32.totalorder %s24, 0
      %p163 = por %p161, %p162
      %s164 = smul.u32 %s26, %s25
      %s165 = smul.u32 %s33, %s37
      %s166 = ssub.s32 %s164, %s165
      %p167 = scmp.eq.s32.totalorder %s166, 0
      %s169 = sadd.s32 %s168, 1
      %s170 = scalar_select %p167, %s168, %s169
      %p173 = pneg %p167
      %p174 = scmp.eq.s32.totalorder %s18, 1
      %p175 = por %p173, %p174
      %p176 = scmp.ne.s32.totalorder %s168, %s171
      %p177 = scmp.eq.s32.totalorder %s18, 0
      %p178 = por %p176, %p177
      %p179 = scmp.ne.s32.totalorder %s168, %s171
      %p180 = scmp.eq.s32.totalorder %s23, 1
      %p181 = por %p179, %p180
      %p182 = scmp.ne.s32.totalorder %s171, %s172
      %p183 = scmp.eq.s32.totalorder %s23, 0
      %p184 = por %p182, %p183
      %p185 = scmp.ne.s32.totalorder %s171, %s172
      %p186 = scmp.eq.s32.totalorder %s24, 1
      %p187 = por %p185, %p186
      %p189 = scmp.ne.s32.totalorder %s172, %s188
      %p190 = scmp.eq.s32.totalorder %s24, 0
      %p191 = por %p189, %p190
      %p192 = scmp.le.s32.totalorder 1, %s18
      %p193 = scmp.lt.s32.totalorder %s18, 3
      %p194 = pnand %p192, %p193
      %p195 = pneg %p194
      // Predicated region
      $region9: #{tpu_custom_call.1} parent=5 // pred_check
        _
      $region10: #{tpu_custom_call.1} parent=5 // pred_check_branch
        %197 = sbr.rel (%p194) target = $region12
      $region11: #{tpu_custom_call.1} parent=5 // pred_region
        %s198 = ssub.s32 %s18, 1
        // Predicated region
        $region13: #{tpu_custom_call.1} parent=11 // pred_check
          %p199 = pneg %p51
        $region14: #{tpu_custom_call.1} parent=11 // pred_check_branch
          %201 = sbr.rel (%p199) target = $region16
        $region15: #{tpu_custom_call.1} parent=11 // pred_region
          %s203 = ssub.s32 128, 128
          %204 = vsyncadd [#allocation4], %s203
          %s205 = sshll.u32 [#allocation3], 4
          %s206 = int_to_ptr.vmem [resolvable:$true] %s205
          %211 = dma.hbm_to_vmem [thread:$0]  %s0, 128, %s206, [#allocation4], 64, 64, 4
        $region16: #{tpu_custom_call.1} parent=11 // pred_fallthru
          _
        // Predicated region
        $region17: #{tpu_custom_call.1} parent=11 // pred_check
          %p212 = pneg %p72
        $region18: #{tpu_custom_call.1} parent=11 // pred_check_branch
          %214 = sbr.rel (%p212) target = $region20
        $region19: #{tpu_custom_call.1} parent=11 // pred_region
          %s216 = ssub.s32 128, 128
          %217 = vsyncadd [#allocation7], %s216
          %s218 = sshll.u32 [#allocation6], 4
          %s219 = int_to_ptr.vmem [resolvable:$true] %s218
          %224 = dma.hbm_to_vmem [thread:$0]  %s1, 128, %s219, [#allocation7], 64, 64, 4
        $region20: #{tpu_custom_call.1} parent=11 // pred_fallthru
          _
        // Predicated region
        $region21: #{tpu_custom_call.1} parent=11 // pred_check
          %p225 = pneg %p93
        $region22: #{tpu_custom_call.1} parent=11 // pred_check_branch
          %227 = sbr.rel (%p225) target = $region24
        $region23: #{tpu_custom_call.1} parent=11 // pred_region
          %s229 = ssub.s32 2048, 2048
          %230 = vsyncadd [#allocation7], %s229
          %s231 = sshll.u32 [#allocation8], 4
          %s232 = int_to_ptr.vmem [resolvable:$true] %s231
          %237 = dma.hbm_to_vmem [thread:$0]  %s2, 2048, %s232, [#allocation7], 64, 64, 4
        $region24: #{tpu_custom_call.1} parent=11 // pred_fallthru
          _
        // Predicated region
        $region25: #{tpu_custom_call.1} parent=11 // pred_check
          %p238 = pneg %p114
        $region26: #{tpu_custom_call.1} parent=11 // pred_check_branch
          %240 = sbr.rel (%p238) target = $region28
        $region27: #{tpu_custom_call.1} parent=11 // pred_region
          _
        $region28: #{tpu_custom_call.1} parent=11 // pred_fallthru
          _
        // Predicated region
        $region29: #{tpu_custom_call.1} parent=11 // pred_check
          %p241 = pneg %p135
        $region30: #{tpu_custom_call.1} parent=11 // pred_check_branch
          %243 = sbr.rel (%p241) target = $region32
        $region31: #{tpu_custom_call.1} parent=11 // pred_region
          %s245 = ssub.s32 2048, 2048
          %246 = vsyncadd [#allocation10], %s245
          %s247 = sshll.u32 [#allocation9], 4
          %s248 = int_to_ptr.vmem [resolvable:$true] %s247
          %253 = dma.hbm_to_vmem [thread:$0]  %s4, 2048, %s248, [#allocation10], 64, 64, 4
        $region32: #{tpu_custom_call.1} parent=11 // pred_fallthru
          _
        // Predicated region
        $region33: #{tpu_custom_call.1} parent=11 // pred_check
          %p254 = pneg %p156
        $region34: #{tpu_custom_call.1} parent=11 // pred_check_branch
          %256 = sbr.rel (%p254) target = $region36
        $region35: #{tpu_custom_call.1} parent=11 // pred_region
          _
        $region36: #{tpu_custom_call.1} parent=11 // pred_fallthru
          _
      $region12: #{tpu_custom_call.1} parent=5 // pred_fallthru
        _
      %p257 = scmp.lt.s32.totalorder %s18, 2
      // Predicated region
      $region37: #{tpu_custom_call.1} parent=5 // pred_check
        %p258 = pneg %p257
      $region38: #{tpu_custom_call.1} parent=5 // pred_check_branch
        %260 = sbr.rel (%p258) target = $region40
      $region39: #{tpu_custom_call.1} parent=5 // pred_region
        _
      $region40: #{tpu_custom_call.1} parent=5 // pred_fallthru
        _
      %p261 = scmp.le.s32.totalorder 1, %s18
      %p262 = scmp.lt.s32.totalorder %s18, 3
      %p263 = pnand %p261, %p262
      %p264 = pneg %p263
      // Predicated region
      $region41: #{tpu_custom_call.1} parent=5 // pred_check
        _
      $region42: #{tpu_custom_call.1} parent=5 // pred_check_branch
        %266 = sbr.rel (%p263) target = $region44
      $region43: #{tpu_custom_call.1} parent=5 // pred_region
        %s267 = ssub.s32 %s18, 1
        // Predicated region
        $region45: #{tpu_custom_call.1} parent=43 // pred_check
          %p268 = pneg %p51
        $region46: #{tpu_custom_call.1} parent=43 // pred_check_branch
          %270 = sbr.rel (%p268) target = $region48
        $region47: #{tpu_custom_call.1} parent=43 // pred_region
          %271 = dma.done [#allocation4], 128
        $region48: #{tpu_custom_call.1} parent=43 // pred_fallthru
          _
        // Predicated region
        $region49: #{tpu_custom_call.1} parent=43 // pred_check
          %p272 = pneg %p72
        $region50: #{tpu_custom_call.1} parent=43 // pred_check_branch
          %274 = sbr.rel (%p272) target = $region52
        $region51: #{tpu_custom_call.1} parent=43 // pred_region
          %275 = dma.done [#allocation7], 128
        $region52: #{tpu_custom_call.1} parent=43 // pred_fallthru
          _
        // Predicated region
        $region53: #{tpu_custom_call.1} parent=43 // pred_check
          %p276 = pneg %p93
        $region54: #{tpu_custom_call.1} parent=43 // pred_check_branch
          %278 = sbr.rel (%p276) target = $region56
        $region55: #{tpu_custom_call.1} parent=43 // pred_region
          %279 = dma.done [#allocation7], 2048
        $region56: #{tpu_custom_call.1} parent=43 // pred_fallthru
          _
        // Predicated region
        $region57: #{tpu_custom_call.1} parent=43 // pred_check
          %p280 = pneg %p135
        $region58: #{tpu_custom_call.1} parent=43 // pred_check_branch
          %282 = sbr.rel (%p280) target = $region60
        $region59: #{tpu_custom_call.1} parent=43 // pred_region
          %283 = dma.done [#allocation10], 2048
        $region60: #{tpu_custom_call.1} parent=43 // pred_fallthru
          _
        %p284 = pneg %p51
        %p285 = pneg %p48
        %p286 = pneg %p72
        %p287 = pneg %p69
        %p288 = pneg %p93
        %p289 = pneg %p90
        %p290 = pneg %p114
        %p291 = pneg %p111
        %p292 = pneg %p135
        %p293 = pneg %p132
        %p294 = pneg %p156
        %p295 = pneg %p153
        %p296 = pneg %p184
        %p297 = pneg %p181
        %s298 = sand.u32 %s171, 1
        %s299 = scalar_lea.sflag [#allocation5], %s298
        %s300 = sand.u32 %s171, 1
        %s301 = smul.addr %s300, 16
        %s302 = scalar_lea.vmem [#allocation11], %s301
        %s303 = smul.u32 %s28, %s27
        %s304 = smul.u32 2, %s303
        %s306 = smul.u32 %s28, 16
        %s307 = sshra.s32 %s306, 3
        %s308 = sand.u32 %s306, 7
        %s309 = smul.addr %s307, 4
        %s310 = scalar_lea.vmem [#allocation3], %s309
        %v311 = vld [vmem:[%s310] sm:$0xf]
        %v312 = vld [vmem:[%s310 + $0x4] sm:$0xf]
        %p313 = scmp.eq.s32.totalorder %s27, 0
        // Predicated region
        $region61: #{tpu_custom_call.1} parent=43 // pred_check
          %p314 = pneg %p313
        $region62: #{tpu_custom_call.1} parent=43 // pred_check_branch
          %316 = sbr.rel (%p314) target = $region64
        $region63: #{tpu_custom_call.1} parent=43 // pred_region
          %v317 = vld [vmem:[#allocation6] sm:$0xf]
          %v318 = vld [vmem:[#allocation6 + $0x4] sm:$0xf]
          %v321 = vunpack.c.l.b16 %v311
          %v322 = vunpack.c.l.b16 %v312
          %v323 = vpack.c.b16 %v322, %v321
          %v326 = vunpack.c.l.b16 %v317
          %v327 = vunpack.c.l.b16 %v318
          %v328 = vpack.c.b16 %v327, %v326
          %vm330 = vcmask 130048
          %v332 = vsel %vm330, %v323, 0
          %334 = vmatprep.subr.bf16.mxu0 0
          %335 = vmatpush1.bf16.msra.mxu0 %v328
          %336 = vmatprep.subr.bf16.mxu0 0
          %337 = vmatpush1.bf16.msra.mxu0 0
          %338 = vmatprep.subr.bf16.mxu0 0
          %339 = vmatpush1.bf16.msra.mxu0 0
          %340 = vmatprep.subr.bf16.mxu0 0
          %341 = vmatpush1.bf16.msra.mxu0 0
          %342 = vmatprep.subr.bf16.mxu0 0
          %343 = vmatpush1.bf16.msra.mxu0 0
          %344 = vmatprep.subr.bf16.mxu0 0
          %345 = vmatpush1.bf16.msra.mxu0 0
          %346 = vmatprep.subr.bf16.mxu0 0
          %347 = vmatpush1.bf16.msra.mxu0 0
          %348 = vmatprep.subr.bf16.mxu0 0
          %349 = vmatpush1.bf16.msra.mxu0 0
          %350 = vmatprep.subr.bf16.mxu0 0
          %351 = vmatpush1.bf16.msra.mxu0 0
          %352 = vmatprep.subr.bf16.mxu0 0
          %353 = vmatpush1.bf16.msra.mxu0 0
          %354 = vmatprep.subr.bf16.mxu0 0
          %355 = vmatpush1.bf16.msra.mxu0 0
          %356 = vmatprep.subr.bf16.mxu0 0
          %357 = vmatpush1.bf16.msra.mxu0 0
          %358 = vmatprep.subr.bf16.mxu0 0
          %359 = vmatpush1.bf16.msra.mxu0 0
          %360 = vmatprep.subr.bf16.mxu0 0
          %361 = vmatpush1.bf16.msra.mxu0 0
          %362 = vmatprep.subr.bf16.mxu0 0
          %363 = vmatpush1.bf16.msra.mxu0 0
          %364 = vmatprep.subr.bf16.mxu0 0
          %365 = vmatpush1.bf16.msra.mxu0 0
          %366 = vmatprep.mubr.bf16.mxu0 0
          %367 = vmatmul.mubr.bf16.gmra.mrb[0].mxu0 %v332
          %v368 = vpop.f32.mrb[0].mxu0
          %v369 = vadd.f32 0.0, %v368
          %v370 = vpop.f32.mrb[0].mxu0
          %v371 = vpop.f32.mrb[0].mxu0
          %v372 = vadd.f32 0.0, %v371
          %v373 = vpop.f32.mrb[0].mxu0
          %374 = vdwg.mxu0
          %v375 = vpack.c.bf16 %v372, %v369
          %s376 = smul.addr %s307, 4
          %s377 = scalar_lea.vmem [#allocation6], %s376
          %v378 = vld [vmem:[%s377] sm:$0xf]
          %v379 = vld [vmem:[%s377 + $0x4] sm:$0xf]
          %v382 = vunpack.c.l.b16 %v378
          %v383 = vunpack.c.l.b16 %v379
          %v384 = vpack.c.b16 %v383, %v382
          %v386 = vld [vmem:[#allocation8] sm:$0xf]
          %v387 = vld [vmem:[#allocation8 + $0x4] sm:$0xf]
          %v388 = vld [vmem:[#allocation8 + $0x8] sm:$0xf]
          %v389 = vld [vmem:[#allocation8 + $0xc] sm:$0xf]
          %v390 = vld [vmem:[#allocation8 + $0x10] sm:$0xf]
          %v391 = vld [vmem:[#allocation8 + $0x14] sm:$0xf]
          %v392 = vld [vmem:[#allocation8 + $0x18] sm:$0xf]
          %v393 = vld [vmem:[#allocation8 + $0x1c] sm:$0xf]
          %v394 = vld [vmem:[#allocation8 + $0x20] sm:$0xf]
          %v395 = vld [vmem:[#allocation8 + $0x24] sm:$0xf]
          %v396 = vld [vmem:[#allocation8 + $0x28] sm:$0xf]
          %v397 = vld [vmem:[#allocation8 + $0x2c] sm:$0xf]
          %v398 = vld [vmem:[#allocation8 + $0x30] sm:$0xf]
          %v399 = vld [vmem:[#allocation8 + $0x34] sm:$0xf]
          %v400 = vld [vmem:[#allocation8 + $0x38] sm:$0xf]
          %v401 = vld [vmem:[#allocation8 + $0x3c] sm:$0xf]
          %v402 = vld [vmem:[#allocation8 + $0x40] sm:$0xf]
          %v403 = vld [vmem:[#allocation8 + $0x44] sm:$0xf]
          %v404 = vld [vmem:[#allocation8 + $0x48] sm:$0xf]
          %v405 = vld [vmem:[#allocation8 + $0x4c] sm:$0xf]
          %v406 = vld [vmem:[#allocation8 + $0x50] sm:$0xf]
          %v407 = vld [vmem:[#allocation8 + $0x54] sm:$0xf]
          %v408 = vld [vmem:[#allocation8 + $0x58] sm:$0xf]
          %v409 = vld [vmem:[#allocation8 + $0x5c] sm:$0xf]
          %v410 = vld [vmem:[#allocation8 + $0x60] sm:$0xf]
          %v411 = vld [vmem:[#allocation8 + $0x64] sm:$0xf]
          %v412 = vld [vmem:[#allocation8 + $0x68] sm:$0xf]
          %v413 = vld [vmem:[#allocation8 + $0x6c] sm:$0xf]
          %v414 = vld [vmem:[#allocation8 + $0x70] sm:$0xf]
          %v415 = vld [vmem:[#allocation8 + $0x74] sm:$0xf]
          %v416 = vld [vmem:[#allocation8 + $0x78] sm:$0xf]
          %v417 = vld [vmem:[#allocation8 + $0x7c] sm:$0xf]
          %v418 = vld [vmem:[%s3] sm:$0x1]
          %v420 = vlaneseq
          %v421 = vshrl.u32 %v420, 7
          %v422 = vsub.s32 0, %v421
          %v423 = vrot.slane %v418, %v422
          %v457 = vunpack.c.l.b16 %v386
          %v458 = vunpack.c.l.b16 %v387
          %v459 = vunpack.c.l.b16 %v388
          %v460 = vunpack.c.l.b16 %v389
          %v461 = vunpack.c.l.b16 %v390
          %v462 = vunpack.c.l.b16 %v391
          %v463 = vunpack.c.l.b16 %v392
          %v464 = vunpack.c.l.b16 %v393
          %v465 = vunpack.c.l.b16 %v394
          %v466 = vunpack.c.l.b16 %v395
          %v467 = vunpack.c.l.b16 %v396
          %v468 = vunpack.c.l.b16 %v397
          %v469 = vunpack.c.l.b16 %v398
          %v470 = vunpack.c.l.b16 %v399
          %v471 = vunpack.c.l.b16 %v400
          %v472 = vunpack.c.l.b16 %v401
          %v473 = vunpack.c.l.b16 %v402
          %v474 = vunpack.c.l.b16 %v403
          %v475 = vunpack.c.l.b16 %v404
          %v476 = vunpack.c.l.b16 %v405
          %v477 = vunpack.c.l.b16 %v406
          %v478 = vunpack.c.l.b16 %v407
          %v479 = vunpack.c.l.b16 %v408
          %v480 = vunpack.c.l.b16 %v409
          %v481 = vunpack.c.l.b16 %v410
          %v482 = vunpack.c.l.b16 %v411
          %v483 = vunpack.c.l.b16 %v412
          %v484 = vunpack.c.l.b16 %v413
          %v485 = vunpack.c.l.b16 %v414
          %v486 = vunpack.c.l.b16 %v415
          %v487 = vunpack.c.l.b16 %v416
          %v488 = vunpack.c.l.b16 %v417
          %v489 = vpack.c.b16 %v458, %v457
          %v490 = vpack.c.b16 %v460, %v459
          %v491 = vpack.c.b16 %v462, %v461
          %v492 = vpack.c.b16 %v464, %v463
          %v493 = vpack.c.b16 %v466, %v465
          %v494 = vpack.c.b16 %v468, %v467
          %v495 = vpack.c.b16 %v470, %v469
          %v496 = vpack.c.b16 %v472, %v471
          %v497 = vpack.c.b16 %v474, %v473
          %v498 = vpack.c.b16 %v476, %v475
          %v499 = vpack.c.b16 %v478, %v477
          %v500 = vpack.c.b16 %v480, %v479
          %v501 = vpack.c.b16 %v482, %v481
          %v502 = vpack.c.b16 %v484, %v483
          %v503 = vpack.c.b16 %v486, %v485
          %v504 = vpack.c.b16 %v488, %v487
          %521 = vmatprep.subr.bf16.mxu0 0
          %522 = vmatpush1.bf16.msra.mxu0 %v489
          %523 = vmatprep.subr.bf16.mxu0 0
          %524 = vmatpush1.bf16.msra.mxu0 %v490
          %525 = vmatprep.subr.bf16.mxu0 0
          %526 = vmatpush1.bf16.msra.mxu0 %v491
          %527 = vmatprep.subr.bf16.mxu0 0
          %528 = vmatpush1.bf16.msra.mxu0 %v492
          %529 = vmatprep.subr.bf16.mxu0 0
          %530 = vmatpush1.bf16.msra.mxu0 %v493
          %531 = vmatprep.subr.bf16.mxu0 0
          %532 = vmatpush1.bf16.msra.mxu0 %v494
          %533 = vmatprep.subr.bf16.mxu0 0
          %534 = vmatpush1.bf16.msra.mxu0 %v495
          %535 = vmatprep.subr.bf16.mxu0 0
          %536 = vmatpush1.bf16.msra.mxu0 %v496
          %537 = vmatprep.subr.bf16.mxu0 0
          %538 = vmatpush1.bf16.msra.mxu0 %v497
          %539 = vmatprep.subr.bf16.mxu0 0
          %540 = vmatpush1.bf16.msra.mxu0 %v498
          %541 = vmatprep.subr.bf16.mxu0 0
          %542 = vmatpush1.bf16.msra.mxu0 %v499
          %543 = vmatprep.subr.bf16.mxu0 0
          %544 = vmatpush1.bf16.msra.mxu0 %v500
          %545 = vmatprep.subr.bf16.mxu0 0
          %546 = vmatpush1.bf16.msra.mxu0 %v501
          %547 = vmatprep.subr.bf16.mxu0 0
          %548 = vmatpush1.bf16.msra.mxu0 %v502
          %549 = vmatprep.subr.bf16.mxu0 0
          %550 = vmatpush1.bf16.msra.mxu0 %v503
          %551 = vmatprep.subr.bf16.mxu0 0
          %552 = vmatpush1.bf16.msra.mxu0 %v504
          %553 = vmatprep.mubr.bf16.mxu0 %v384
          %554 = vmatmul.mubr.bf16.gmra.mrb[0].mxu0 %v375
          %v555 = vpop.f32.mrb[0].mxu0
          %v556 = vadd.f32 %v423, %v555
          %v557 = vpop.f32.mrb[0].mxu0
          %v558 = vpop.f32.mrb[0].mxu0
          %v559 = vadd.f32 %v423, %v558
          %v560 = vpop.f32.mrb[0].mxu0
          %561 = vdwg.mxu0
          %v562 = vmax.f32 %v556, 0.0
          %v563 = vmax.f32 %v559, 0.0
          %v564 = vpack.c.bf16 %v563, %v562
          %s565 = sshra.s32 %s306, 4
          %s566 = sand.u32 %s306, 15
          %s567 = smul.addr %s565, 8
          %s568 = scalar_lea.vmem [#allocation2], %s567
          %569 = vst [vmem:[%s568] sm:$0xff] %v564
        $region64: #{tpu_custom_call.1} parent=43 // pred_fallthru
          _
        %p570 = scmp.eq.s32.totalorder %s27, 1
        // Predicated region
        $region65: #{tpu_custom_call.1} parent=43 // pred_check
          %p571 = pneg %p570
        $region66: #{tpu_custom_call.1} parent=43 // pred_check_branch
          %573 = sbr.rel (%p571) target = $region68
        $region67: #{tpu_custom_call.1} parent=43 // pred_region
          %v574 = vld [vmem:[#allocation2] sm:$0xff]
          %v577 = vunpack.c.l.b16 %v311
          %v578 = vunpack.c.l.b16 %v312
          %v579 = vpack.c.b16 %v578, %v577
          %vm580 = vcmask 130048
          %v582 = vsel %vm580, %v579, 0
          %584 = vmatprep.subr.bf16.mxu0 0
          %585 = vmatpush1.bf16.msra.mxu0 %v574
          %586 = vmatprep.subr.bf16.mxu0 0
          %587 = vmatpush1.bf16.msra.mxu0 0
          %588 = vmatprep.subr.bf16.mxu0 0
          %589 = vmatpush1.bf16.msra.mxu0 0
          %590 = vmatprep.subr.bf16.mxu0 0
          %591 = vmatpush1.bf16.msra.mxu0 0
          %592 = vmatprep.subr.bf16.mxu0 0
          %593 = vmatpush1.bf16.msra.mxu0 0
          %594 = vmatprep.subr.bf16.mxu0 0
          %595 = vmatpush1.bf16.msra.mxu0 0
          %596 = vmatprep.subr.bf16.mxu0 0
          %597 = vmatpush1.bf16.msra.mxu0 0
          %598 = vmatprep.subr.bf16.mxu0 0
          %599 = vmatpush1.bf16.msra.mxu0 0
          %600 = vmatprep.subr.bf16.mxu0 0
          %601 = vmatpush1.bf16.msra.mxu0 0
          %602 = vmatprep.subr.bf16.mxu0 0
          %603 = vmatpush1.bf16.msra.mxu0 0
          %604 = vmatprep.subr.bf16.mxu0 0
          %605 = vmatpush1.bf16.msra.mxu0 0
          %606 = vmatprep.subr.bf16.mxu0 0
          %607 = vmatpush1.bf16.msra.mxu0 0
          %608 = vmatprep.subr.bf16.mxu0 0
          %609 = vmatpush1.bf16.msra.mxu0 0
          %610 = vmatprep.subr.bf16.mxu0 0
          %611 = vmatpush1.bf16.msra.mxu0 0
          %612 = vmatprep.subr.bf16.mxu0 0
          %613 = vmatpush1.bf16.msra.mxu0 0
          %614 = vmatprep.subr.bf16.mxu0 0
          %615 = vmatpush1.bf16.msra.mxu0 0
          %616 = vmatprep.mubr.bf16.mxu0 0
          %617 = vmatmul.mubr.bf16.gmra.mrb[0].mxu0 %v582
          %v618 = vpop.f32.mrb[0].mxu0
          %v619 = vadd.f32 0.0, %v618
          %v620 = vpop.f32.mrb[0].mxu0
          %v621 = vpop.f32.mrb[0].mxu0
          %v622 = vadd.f32 0.0, %v621
          %v623 = vpop.f32.mrb[0].mxu0
          %624 = vdwg.mxu0
          %v625 = vpack.c.bf16 %v622, %v619
          %s626 = sshra.s32 %s306, 4
          %s627 = sand.u32 %s306, 15
          %s628 = smul.addr %s626, 8
          %s629 = scalar_lea.vmem [#allocation2], %s628
          %v630 = vld [vmem:[%s629] sm:$0xff]
          %v631 = vld [vmem:[#allocation9] sm:$0xf]
          %v632 = vld [vmem:[#allocation9 + $0x4] sm:$0xf]
          %v633 = vld [vmem:[#allocation9 + $0x8] sm:$0xf]
          %v634 = vld [vmem:[#allocation9 + $0xc] sm:$0xf]
          %v635 = vld [vmem:[#allocation9 + $0x10] sm:$0xf]
          %v636 = vld [vmem:[#allocation9 + $0x14] sm:$0xf]
          %v637 = vld [vmem:[#allocation9 + $0x18] sm:$0xf]
          %v638 = vld [vmem:[#allocation9 + $0x1c] sm:$0xf]
          %v639 = vld [vmem:[#allocation9 + $0x20] sm:$0xf]
          %v640 = vld [vmem:[#allocation9 + $0x24] sm:$0xf]
          %v641 = vld [vmem:[#allocation9 + $0x28] sm:$0xf]
          %v642 = vld [vmem:[#allocation9 + $0x2c] sm:$0xf]
          %v643 = vld [vmem:[#allocation9 + $0x30] sm:$0xf]
          %v644 = vld [vmem:[#allocation9 + $0x34] sm:$0xf]
          %v645 = vld [vmem:[#allocation9 + $0x38] sm:$0xf]
          %v646 = vld [vmem:[#allocation9 + $0x3c] sm:$0xf]
          %v647 = vld [vmem:[#allocation9 + $0x40] sm:$0xf]
          %v648 = vld [vmem:[#allocation9 + $0x44] sm:$0xf]
          %v649 = vld [vmem:[#allocation9 + $0x48] sm:$0xf]
          %v650 = vld [vmem:[#allocation9 + $0x4c] sm:$0xf]
          %v651 = vld [vmem:[#allocation9 + $0x50] sm:$0xf]
          %v652 = vld [vmem:[#allocation9 + $0x54] sm:$0xf]
          %v653 = vld [vmem:[#allocation9 + $0x58] sm:$0xf]
          %v654 = vld [vmem:[#allocation9 + $0x5c] sm:$0xf]
          %v655 = vld [vmem:[#allocation9 + $0x60] sm:$0xf]
          %v656 = vld [vmem:[#allocation9 + $0x64] sm:$0xf]
          %v657 = vld [vmem:[#allocation9 + $0x68] sm:$0xf]
          %v658 = vld [vmem:[#allocation9 + $0x6c] sm:$0xf]
          %v659 = vld [vmem:[#allocation9 + $0x70] sm:$0xf]
          %v660 = vld [vmem:[#allocation9 + $0x74] sm:$0xf]
          %v661 = vld [vmem:[#allocation9 + $0x78] sm:$0xf]
          %v662 = vld [vmem:[#allocation9 + $0x7c] sm:$0xf]
          %v663 = vld [vmem:[%s5] sm:$0x1]
          %v665 = vlaneseq
          %v666 = vshrl.u32 %v665, 7
          %v667 = vsub.s32 0, %v666
          %v668 = vrot.slane %v663, %v667
          %v702 = vunpack.c.l.b16 %v631
          %v703 = vunpack.c.l.b16 %v632
          %v704 = vunpack.c.l.b16 %v633
          %v705 = vunpack.c.l.b16 %v634
          %v706 = vunpack.c.l.b16 %v635
          %v707 = vunpack.c.l.b16 %v636
          %v708 = vunpack.c.l.b16 %v637
          %v709 = vunpack.c.l.b16 %v638
          %v710 = vunpack.c.l.b16 %v639
          %v711 = vunpack.c.l.b16 %v640
          %v712 = vunpack.c.l.b16 %v641
          %v713 = vunpack.c.l.b16 %v642
          %v714 = vunpack.c.l.b16 %v643
          %v715 = vunpack.c.l.b16 %v644
          %v716 = vunpack.c.l.b16 %v645
          %v717 = vunpack.c.l.b16 %v646
          %v718 = vunpack.c.l.b16 %v647
          %v719 = vunpack.c.l.b16 %v648
          %v720 = vunpack.c.l.b16 %v649
          %v721 = vunpack.c.l.b16 %v650
          %v722 = vunpack.c.l.b16 %v651
          %v723 = vunpack.c.l.b16 %v652
          %v724 = vunpack.c.l.b16 %v653
          %v725 = vunpack.c.l.b16 %v654
          %v726 = vunpack.c.l.b16 %v655
          %v727 = vunpack.c.l.b16 %v656
          %v728 = vunpack.c.l.b16 %v657
          %v729 = vunpack.c.l.b16 %v658
          %v730 = vunpack.c.l.b16 %v659
          %v731 = vunpack.c.l.b16 %v660
          %v732 = vunpack.c.l.b16 %v661
          %v733 = vunpack.c.l.b16 %v662
          %v734 = vpack.c.b16 %v703, %v702
          %v735 = vpack.c.b16 %v705, %v704
          %v736 = vpack.c.b16 %v707, %v706
          %v737 = vpack.c.b16 %v709, %v708
          %v738 = vpack.c.b16 %v711, %v710
          %v739 = vpack.c.b16 %v713, %v712
          %v740 = vpack.c.b16 %v715, %v714
          %v741 = vpack.c.b16 %v717, %v716
          %v742 = vpack.c.b16 %v719, %v718
          %v743 = vpack.c.b16 %v721, %v720
          %v744 = vpack.c.b16 %v723, %v722
          %v745 = vpack.c.b16 %v725, %v724
          %v746 = vpack.c.b16 %v727, %v726
          %v747 = vpack.c.b16 %v729, %v728
          %v748 = vpack.c.b16 %v731, %v730
          %v749 = vpack.c.b16 %v733, %v732
          %766 = vmatprep.subr.bf16.mxu0 0
          %767 = vmatpush1.bf16.msra.mxu0 %v734
          %768 = vmatprep.subr.bf16.mxu0 0
          %769 = vmatpush1.bf16.msra.mxu0 %v735
          %770 = vmatprep.subr.bf16.mxu0 0
          %771 = vmatpush1.bf16.msra.mxu0 %v736
          %772 = vmatprep.subr.bf16.mxu0 0
          %773 = vmatpush1.bf16.msra.mxu0 %v737
          %774 = vmatprep.subr.bf16.mxu0 0
          %775 = vmatpush1.bf16.msra.mxu0 %v738
          %776 = vmatprep.subr.bf16.mxu0 0
          %777 = vmatpush1.bf16.msra.mxu0 %v739
          %778 = vmatprep.subr.bf16.mxu0 0
          %779 = vmatpush1.bf16.msra.mxu0 %v740
          %780 = vmatprep.subr.bf16.mxu0 0
          %781 = vmatpush1.bf16.msra.mxu0 %v741
          %782 = vmatprep.subr.bf16.mxu0 0
          %783 = vmatpush1.bf16.msra.mxu0 %v742
          %784 = vmatprep.subr.bf16.mxu0 0
          %785 = vmatpush1.bf16.msra.mxu0 %v743
          %786 = vmatprep.subr.bf16.mxu0 0
          %787 = vmatpush1.bf16.msra.mxu0 %v744
          %788 = vmatprep.subr.bf16.mxu0 0
          %789 = vmatpush1.bf16.msra.mxu0 %v745
          %790 = vmatprep.subr.bf16.mxu0 0
          %791 = vmatpush1.bf16.msra.mxu0 %v746
          %792 = vmatprep.subr.bf16.mxu0 0
          %793 = vmatpush1.bf16.msra.mxu0 %v747
          %794 = vmatprep.subr.bf16.mxu0 0
          %795 = vmatpush1.bf16.msra.mxu0 %v748
          %796 = vmatprep.subr.bf16.mxu0 0
          %797 = vmatpush1.bf16.msra.mxu0 %v749
          %798 = vmatprep.mubr.bf16.mxu0 %v630
          %799 = vmatmul.mubr.bf16.gmra.mrb[0].mxu0 %v625
          %v800 = vpop.f32.mrb[0].mxu0
          %v801 = vadd.f32 %v668, %v800
          %v802 = vpop.f32.mrb[0].mxu0
          %v803 = vpop.f32.mrb[0].mxu0
          %v804 = vadd.f32 %v668, %v803
          %v805 = vpop.f32.mrb[0].mxu0
          %806 = vdwg.mxu0
          %807 = vst [vmem:[%s302] sm:$0xff] %v801
          %808 = vst [vmem:[%s302 + $0x8] sm:$0xff] %v804
        $region68: #{tpu_custom_call.1} parent=43 // pred_fallthru
          _
        %s809 = sand.u32 %s171, 1
        %s810 = scalar_lea.sflag [#allocation5], %s809
        %s811 = sand.u32 %s171, 1
        %s812 = smul.addr %s811, 16
        %s813 = scalar_lea.vmem [#allocation11], %s812
        // Predicated region
        $region69: #{tpu_custom_call.1} parent=43 // pred_check
          %p814 = pneg %p181
        $region70: #{tpu_custom_call.1} parent=43 // pred_check_branch
          %816 = sbr.rel (%p814) target = $region72
        $region71: #{tpu_custom_call.1} parent=43 // pred_region
          %s817 = smul.u32 %s28, %s27
          %s818 = smul.u32 2, %s817
          %s820 = ssub.s32 256, 256
          %821 = vsyncadd %s810, %s820
          %s822 = smul.addr %s818, 128
          %s823 = scalar_lea.hbm %s6, %s822
          %s824 = sshll.u32 %s813, 4
          %s825 = int_to_ptr.vmem [resolvable:$true] %s824
          %830 = dma.vmem_to_hbm [thread:$0]  %s825, 256, %s823, %s810, 128, 128, 8
        $region72: #{tpu_custom_call.1} parent=43 // pred_fallthru
          _
      $region44: #{tpu_custom_call.1} parent=5 // pred_fallthru
        _
      %p831 = scmp.le.s32.totalorder 2, %s18
      // Predicated region
      $region73: #{tpu_custom_call.1} parent=5 // pred_check
        %p832 = pneg %p831
      $region74: #{tpu_custom_call.1} parent=5 // pred_check_branch
        %834 = sbr.rel (%p832) target = $region76
      $region75: #{tpu_custom_call.1} parent=5 // pred_region
        %s835 = ssub.s32 %s18, 2
        // Predicated region
        $region77: #{tpu_custom_call.1} parent=75 // pred_check
          %p836 = pneg %p187
        $region78: #{tpu_custom_call.1} parent=75 // pred_check_branch
          %838 = sbr.rel (%p836) target = $region80
        $region79: #{tpu_custom_call.1} parent=75 // pred_region
          %s839 = sand.u32 %s172, 1
          %s840 = scalar_lea.sflag [#allocation5], %s839
          %s841 = sand.u32 %s172, 1
          %s842 = smul.addr %s841, 16
          %s843 = scalar_lea.vmem [#allocation11], %s842
          %844 = dma.done %s840, 256
        $region80: #{tpu_custom_call.1} parent=75 // pred_fallthru
          _
      $region76: #{tpu_custom_call.1} parent=5 // pred_fallthru
        _
    $region6: #{tpu_custom_call.1} parent=1 // loop_footer
      %s22 = sadd.s32 1, %s18
    $region7: #{tpu_custom_call.1} parent=1 // loop_footer_branch
      %17 = sbr.rel target = $region3
    $region8: #{tpu_custom_call.1} parent=1 // loop_exit
      _
    %845 = vsyncpa [#allocation4], 1
    %s846 = scalar_lea.sflag [#allocation4], 1
    %847 = vsyncpa %s846, 1
    %848 = vsyncpa [#allocation7], 1
    %849 = vsyncpa [#allocation10], 1
    %850 = vsyncpa [#allocation5], 1
    %s851 = scalar_lea.sflag [#allocation5], 1
    %852 = vsyncpa %s851, 1

</llo_original>
